<compile_context>
chip_gen: v7x
topology: tpu7x:2x2x1
jax: 0.10.0
libtpu: 0.0.40
codegen_flags: <defaults>
</compile_context>

<pallas_src>
import functools

import jax
import jax.numpy as jnp
from jax import lax
from jax.experimental import pallas as pl
from jax.experimental.pallas import tpu as pltpu


def autopad(k, p=None, d=1):
    if d > 1:
        k = d * (k - 1) + 1 if isinstance(k, int) else [d * (x - 1) + 1 for x in k]
    if p is None:
        p = k // 2 if isinstance(k, int) else [x // 2 for x in k]
    return p


def _conv_bn_silu_kernel(x_ref, w_ref, mask_ref, o_ref, cols_ref, *,
                         kh_sz, kw_sz, pad, h_out, w_out, approx_recip):
    """Fused Conv2d(s=1,d=1,g=1) + folded-BN + SiLU for the whole (tiny) batch.

    x_ref:    (N, C1P, p + (H+2p)*W + p)  H-padded, flattened, channel-padded
                                          input (channel C1 is all-ones: BN shift)
    w_ref:    (C2, KH*KW*C1P)             weights, BN scale + shift folded in
    mask_ref: (KW, 1, H*W)                W-boundary validity mask per kw
    o_ref:    (N, C2, H*W)                lane-dense output (NCHW, flat spatial)
    cols_ref: (KH*KW*C1P, N*H*W)          VMEM scratch: batched im2col operand
    """
    hw = h_out * w_out
    n_img = o_ref.shape[0]
    c1p = x_ref.shape[1]

    # --- batched im2col fill: every tap of every image into one scratch ----
    # Each tap is a pure lane slice of the flattened input (stride-1 conv =>
    # flat shift of kh*W + kw); the un-padded W boundary is a per-kw lane mask.
    for n in range(n_img):                       # N is tiny & static: unrolled
        col0 = n * hw                            # multiple of HW=256 -> aligned
        for kh in range(kh_sz):
            for kw in range(kw_sz):
                start = kh * w_out + kw
                patch = x_ref[n, :, start:start + hw]            # (C1P, HW)
                if kw != pad:
                    # zero contributions that wrapped across the W boundary
                    patch = patch * mask_ref[kw]
                t = kh * kw_sz + kw
                # full sublane-tile store: C1P is padded to the dtype granule
                cols_ref[t * c1p:(t + 1) * c1p, col0:col0 + hw] = patch

    # --- ONE MXU matmul for the whole batch; BN shift folded via ones row ---
    acc = jnp.dot(w_ref[...], cols_ref[...],
                  preferred_element_type=jnp.float32)      # (C2, N*HW), f32

    # --- SiLU epilogue in f32 (v5e has no bf16 VPU/EUP) ---------------------
    # approx=True routes the divide to the EUP vrcp slot (production config).
    sig = pl.reciprocal(1.0 + jnp.exp(-acc), approx=approx_recip)
    y = acc * sig

    # lane-aligned per-image stores (offsets are multiples of HW=256)
    for n in range(n_img):
        o_ref[n] = y[:, n * hw:(n + 1) * hw].astype(o_ref.dtype)


@functools.partial(jax.jit, static_argnames=("compute_dtype", "approx_act"))
def conv_bn_silu(x_nchw, w_oihw, gamma, beta, running_mean, running_var,
                 eps=1e-5, compute_dtype=jnp.float32, approx_act=False):
    """NCHW in / NCHW out, matching PyTorch Conv(c1, c2, k=3) in eval mode."""
    N, C1, H, W = x_nchw.shape
    C2, _, KH, KW = w_oihw.shape
    assert KH == KW and KH % 2 == 1, "odd square kernels only"
    pad = autopad(KH)                      # 'same' padding, stride 1
    hw = H * W

    # Sublane-packing granule of the compute dtype: 8 rows (f32) / 16 (bf16).
    granule = 8 * (4 // jnp.dtype(compute_dtype).itemsize)
    # Pad C1 so every im2col tap-block is a full sublane tile, reserving one
    # extra (all-ones) channel that carries the BN shift through the matmul.
    C1P = -(-(C1 + 1) // granule) * granule

    # --- BN folding: scale into weights, shift onto the ones-channel column -
    scale = (gamma / jnp.sqrt(running_var + eps)).astype(jnp.float32)      # (C2,)
    shift = (beta - running_mean * scale).astype(jnp.float32)              # (C2,)
    w_f = w_oihw.astype(jnp.float32) * scale[:, None, None, None]          # (C2,C1,KH,KW)
    w_p = jnp.zeros((C2, C1P, KH, KW), jnp.float32).at[:, :C1].set(w_f)
    w_p = w_p.at[:, C1, pad, pad].set(shift)     # shift rides ones channel @ center tap
    # contraction ordering = (kh, kw, c), matching the in-kernel im2col fill
    w_mat = jnp.transpose(w_p, (0, 2, 3, 1)).reshape(C2, KH * KW * C1P)
    w_mat = w_mat.astype(compute_dtype)                                    # (C2, K)

    # --- Input prep: channel-pad (+ones channel), H-pad, flatten, guard pad -
    xc = jnp.zeros((N, C1P, H, W), x_nchw.dtype).at[:, :C1].set(x_nchw)
    xc = xc.at[:, C1].set(1.0)                   # ones channel (BN shift carrier)
    x_v = jnp.pad(xc, ((0, 0), (0, 0), (pad, pad), (0, 0)))                # (N,C1P,H+2p,W)
    x_lin = jnp.pad(x_v.reshape(N, C1P, (H + 2 * pad) * W),
                    ((0, 0), (0, 0), (pad, pad))).astype(compute_dtype)    # (N,C1P,L)

    # --- Per-kw lane mask for the (un-padded) W boundary ---------------------
    w_idx = jnp.arange(hw, dtype=jnp.int32) % W                            # (HW,)
    col = w_idx[None, :] + jnp.arange(KW, dtype=jnp.int32)[:, None] - pad  # (KW,HW)
    mask = ((col >= 0) & (col < W)).astype(compute_dtype)[:, None, :]      # (KW,1,HW)

    kernel = functools.partial(_conv_bn_silu_kernel, kh_sz=KH, kw_sz=KW,
                               pad=pad, h_out=H, w_out=W,
                               approx_recip=approx_act)
    vmem = pl.BlockSpec(memory_space=pltpu.MemorySpace.VMEM)

    out_flat = pl.pallas_call(
        kernel,
        out_shape=jax.ShapeDtypeStruct((N, C2, hw), x_nchw.dtype),
        in_specs=[vmem, vmem, vmem],
        out_specs=vmem,
        scratch_shapes=[pltpu.VMEM((KH * KW * C1P, N * hw), compute_dtype)],
    )(x_lin, w_mat, mask)

    return out_flat.reshape(N, C2, H, W)   # free reshape: already NCHW-ordered


def _reference(x_nchw, w_oihw, gamma, beta, running_mean, running_var, eps=1e-5):
    """Pure-JAX reference (lax conv + BN + SiLU) for correctness check."""
    pad = autopad(w_oihw.shape[2])
    y = lax.conv_general_dilated(
        x_nchw, w_oihw,
        window_strides=(1, 1),
        padding=((pad, pad), (pad, pad)),
        dimension_numbers=("NCHW", "OIHW", "NCHW"),
    )
    scale = gamma / jnp.sqrt(running_var + eps)
    shift = beta - running_mean * scale
    y = y * scale[None, :, None, None] + shift[None, :, None, None]
    return y * jax.nn.sigmoid(y)


if __name__ == "__main__":
    # Module config: Conv(c1=4, c2=8, k=3) -> conv weight (8, 4, 3, 3), BN(8)
    N, C1, C2, H, W, K = 2, 4, 8, 16, 16, 3

    key = jax.random.PRNGKey(0)
    k_x, k_w, k_g, k_b, k_m, k_v = jax.random.split(key, 6)

    x = jax.random.normal(k_x, (N, C1, H, W), dtype=jnp.float32)
    w = jax.random.normal(k_w, (C2, C1, K, K), dtype=jnp.float32) * 0.1
    gamma = 1.0 + 0.1 * jax.random.normal(k_g, (C2,), dtype=jnp.float32)
    beta = 0.1 * jax.random.normal(k_b, (C2,), dtype=jnp.float32)
    running_mean = 0.1 * jax.random.normal(k_m, (C2,), dtype=jnp.float32)
    running_var = jnp.abs(jax.random.normal(k_v, (C2,), dtype=jnp.float32)) + 1.0

    ref = _reference(x, w, gamma, beta, running_mean, running_var)

    # f32 operands, exact reciprocal: tight match vs. the f32 reference.
    out = conv_bn_silu(x, w, gamma, beta, running_mean, running_var)
    out = jax.block_until_ready(out)
    assert out.shape == (N, C2, H, W)
    assert jnp.allclose(out, ref, atol=1e-4, rtol=1e-4), "f32 kernel mismatch"

    # bf16 operands + approx EUP reciprocal (v6e/v7x production config),
    # f32 MXU accumulation and f32 epilogue: looser tolerance.
    out_bf16 = conv_bn_silu(x, w, gamma, beta, running_mean, running_var,
                            compute_dtype=jnp.bfloat16, approx_act=True)
    out_bf16 = jax.block_until_ready(out_bf16)
    assert out_bf16.shape == (N, C2, H, W)
    assert jnp.allclose(out_bf16, ref, atol=5e-2, rtol=5e-2), "bf16 kernel mismatch"

    print("KERNEL_OK")
</pallas_src>

<mosaic_0001>
module attributes {stable_mosaic.version = 11 : i64} {
  func.func @_conv_bn_silu_kernel(%arg0: memref<2x8x290xf32, #tpu.memory_space<vmem>>, %arg1: memref<8x72xf32, #tpu.memory_space<vmem>>, %arg2: memref<3x1x256xf32, #tpu.memory_space<vmem>>, %arg3: memref<2x8x256xf32, #tpu.memory_space<vmem>>, %arg4: memref<72x512xf32, #tpu.memory_space<vmem>>) attributes {dimension_semantics = [], scalar_prefetch = 0 : i64, scratch_operands = 1 : i64, tpu.core_type = #tpu.core_type<tc>} {
    %c0 = arith.constant 0 : index
    %c0_0 = arith.constant 0 : index
    %c0_1 = arith.constant 0 : index
    %0 = vector.load %arg0[%c0, %c0_0, %c0_1] : memref<2x8x290xf32, #tpu.memory_space<vmem>>, vector<1x8x256xf32>
    %1 = vector.shape_cast %0 : vector<1x8x256xf32> to vector<8x256xf32>
    %c0_2 = arith.constant 0 : index
    %c0_3 = arith.constant 0 : index
    %c0_4 = arith.constant 0 : index
    %2 = vector.load %arg2[%c0_2, %c0_3, %c0_4] : memref<3x1x256xf32, #tpu.memory_space<vmem>>, vector<1x1x256xf32>
    %3 = vector.shape_cast %2 : vector<1x1x256xf32> to vector<1x256xf32>
    %4 = vector.broadcast %3 : vector<1x256xf32> to vector<8x256xf32>
    %5 = arith.mulf %1, %4 : vector<8x256xf32>
    %c0_5 = arith.constant 0 : index
    %c0_6 = arith.constant 0 : index
    %6 = vector.load %arg4[%c0_5, %c0_6] : memref<72x512xf32, #tpu.memory_space<vmem>>, vector<8x256xf32>
    tpu.vector_store %arg4[%c0_5, %c0_6], %5 {strides = array<i32>} : memref<72x512xf32, #tpu.memory_space<vmem>>, vector<8x256xf32>,
    %c0_7 = arith.constant 0 : index
    %c0_8 = arith.constant 0 : index
    %c1 = arith.constant 1 : index
    %7 = vector.load %arg0[%c0_7, %c0_8, %c1] : memref<2x8x290xf32, #tpu.memory_space<vmem>>, vector<1x8x256xf32>
    %8 = vector.shape_cast %7 : vector<1x8x256xf32> to vector<8x256xf32>
    %c8 = arith.constant 8 : index
    %c0_9 = arith.constant 0 : index
    %9 = vector.load %arg4[%c8, %c0_9] : memref<72x512xf32, #tpu.memory_space<vmem>>, vector<8x256xf32>
    tpu.vector_store %arg4[%c8, %c0_9], %8 {strides = array<i32>} : memref<72x512xf32, #tpu.memory_space<vmem>>, vector<8x256xf32>,
    %c0_10 = arith.constant 0 : index
    %c0_11 = arith.constant 0 : index
    %c2 = arith.constant 2 : index
    %10 = vector.load %arg0[%c0_10, %c0_11, %c2] : memref<2x8x290xf32, #tpu.memory_space<vmem>>, vector<1x8x256xf32>
    %11 = vector.shape_cast %10 : vector<1x8x256xf32> to vector<8x256xf32>
    %c2_12 = arith.constant 2 : index
    %c0_13 = arith.constant 0 : index
    %c0_14 = arith.constant 0 : index
    %12 = vector.load %arg2[%c2_12, %c0_13, %c0_14] : memref<3x1x256xf32, #tpu.memory_space<vmem>>, vector<1x1x256xf32>
    %13 = vector.shape_cast %12 : vector<1x1x256xf32> to vector<1x256xf32>
    %14 = vector.broadcast %13 : vector<1x256xf32> to vector<8x256xf32>
    %15 = arith.mulf %11, %14 : vector<8x256xf32>
    %c16 = arith.constant 16 : index
    %c0_15 = arith.constant 0 : index
    %16 = vector.load %arg4[%c16, %c0_15] : memref<72x512xf32, #tpu.memory_space<vmem>>, vector<8x256xf32>
    tpu.vector_store %arg4[%c16, %c0_15], %15 {strides = array<i32>} : memref<72x512xf32, #tpu.memory_space<vmem>>, vector<8x256xf32>,
    %c0_16 = arith.constant 0 : index
    %c0_17 = arith.constant 0 : index
    %c16_18 = arith.constant 16 : index
    %17 = vector.load %arg0[%c0_16, %c0_17, %c16_18] : memref<2x8x290xf32, #tpu.memory_space<vmem>>, vector<1x8x256xf32>
    %18 = vector.shape_cast %17 : vector<1x8x256xf32> to vector<8x256xf32>
    %c0_19 = arith.constant 0 : index
    %c0_20 = arith.constant 0 : index
    %c0_21 = arith.constant 0 : index
    %19 = vector.load %arg2[%c0_19, %c0_20, %c0_21] : memref<3x1x256xf32, #tpu.memory_space<vmem>>, vector<1x1x256xf32>
    %20 = vector.shape_cast %19 : vector<1x1x256xf32> to vector<1x256xf32>
    %21 = vector.broadcast %20 : vector<1x256xf32> to vector<8x256xf32>
    %22 = arith.mulf %18, %21 : vector<8x256xf32>
    %c24 = arith.constant 24 : index
    %c0_22 = arith.constant 0 : index
    %23 = vector.load %arg4[%c24, %c0_22] : memref<72x512xf32, #tpu.memory_space<vmem>>, vector<8x256xf32>
    tpu.vector_store %arg4[%c24, %c0_22], %22 {strides = array<i32>} : memref<72x512xf32, #tpu.memory_space<vmem>>, vector<8x256xf32>,
    %c0_23 = arith.constant 0 : index
    %c0_24 = arith.constant 0 : index
    %c17 = arith.constant 17 : index
    %24 = vector.load %arg0[%c0_23, %c0_24, %c17] : memref<2x8x290xf32, #tpu.memory_space<vmem>>, vector<1x8x256xf32>
    %25 = vector.shape_cast %24 : vector<1x8x256xf32> to vector<8x256xf32>
    %c32 = arith.constant 32 : index
    %c0_25 = arith.constant 0 : index
    %26 = vector.load %arg4[%c32, %c0_25] : memref<72x512xf32, #tpu.memory_space<vmem>>, vector<8x256xf32>
    tpu.vector_store %arg4[%c32, %c0_25], %25 {strides = array<i32>} : memref<72x512xf32, #tpu.memory_space<vmem>>, vector<8x256xf32>,
    %c0_26 = arith.constant 0 : index
    %c0_27 = arith.constant 0 : index
    %c18 = arith.constant 18 : index
    %27 = vector.load %arg0[%c0_26, %c0_27, %c18] : memref<2x8x290xf32, #tpu.memory_space<vmem>>, vector<1x8x256xf32>
    %28 = vector.shape_cast %27 : vector<1x8x256xf32> to vector<8x256xf32>
    %c2_28 = arith.constant 2 : index
    %c0_29 = arith.constant 0 : index
    %c0_30 = arith.constant 0 : index
    %29 = vector.load %arg2[%c2_28, %c0_29, %c0_30] : memref<3x1x256xf32, #tpu.memory_space<vmem>>, vector<1x1x256xf32>
    %30 = vector.shape_cast %29 : vector<1x1x256xf32> to vector<1x256xf32>
    %31 = vector.broadcast %30 : vector<1x256xf32> to vector<8x256xf32>
    %32 = arith.mulf %28, %31 : vector<8x256xf32>
    %c40 = arith.constant 40 : index
    %c0_31 = arith.constant 0 : index
    %33 = vector.load %arg4[%c40, %c0_31] : memref<72x512xf32, #tpu.memory_space<vmem>>, vector<8x256xf32>
    tpu.vector_store %arg4[%c40, %c0_31], %32 {strides = array<i32>} : memref<72x512xf32, #tpu.memory_space<vmem>>, vector<8x256xf32>,
    %c0_32 = arith.constant 0 : index
    %c0_33 = arith.constant 0 : index
    %c32_34 = arith.constant 32 : index
    %34 = vector.load %arg0[%c0_32, %c0_33, %c32_34] : memref<2x8x290xf32, #tpu.memory_space<vmem>>, vector<1x8x256xf32>
    %35 = vector.shape_cast %34 : vector<1x8x256xf32> to vector<8x256xf32>
    %c0_35 = arith.constant 0 : index
    %c0_36 = arith.constant 0 : index
    %c0_37 = arith.constant 0 : index
    %36 = vector.load %arg2[%c0_35, %c0_36, %c0_37] : memref<3x1x256xf32, #tpu.memory_space<vmem>>, vector<1x1x256xf32>
    %37 = vector.shape_cast %36 : vector<1x1x256xf32> to vector<1x256xf32>
    %38 = vector.broadcast %37 : vector<1x256xf32> to vector<8x256xf32>
    %39 = arith.mulf %35, %38 : vector<8x256xf32>
    %c48 = arith.constant 48 : index
    %c0_38 = arith.constant 0 : index
    %40 = vector.load %arg4[%c48, %c0_38] : memref<72x512xf32, #tpu.memory_space<vmem>>, vector<8x256xf32>
    tpu.vector_store %arg4[%c48, %c0_38], %39 {strides = array<i32>} : memref<72x512xf32, #tpu.memory_space<vmem>>, vector<8x256xf32>,
    %c0_39 = arith.constant 0 : index
    %c0_40 = arith.constant 0 : index
    %c33 = arith.constant 33 : index
    %41 = vector.load %arg0[%c0_39, %c0_40, %c33] : memref<2x8x290xf32, #tpu.memory_space<vmem>>, vector<1x8x256xf32>
    %42 = vector.shape_cast %41 : vector<1x8x256xf32> to vector<8x256xf32>
    %c56 = arith.constant 56 : index
    %c0_41 = arith.constant 0 : index
    %43 = vector.load %arg4[%c56, %c0_41] : memref<72x512xf32, #tpu.memory_space<vmem>>, vector<8x256xf32>
    tpu.vector_store %arg4[%c56, %c0_41], %42 {strides = array<i32>} : memref<72x512xf32, #tpu.memory_space<vmem>>, vector<8x256xf32>,
    %c0_42 = arith.constant 0 : index
    %c0_43 = arith.constant 0 : index
    %c34 = arith.constant 34 : index
    %44 = vector.load %arg0[%c0_42, %c0_43, %c34] : memref<2x8x290xf32, #tpu.memory_space<vmem>>, vector<1x8x256xf32>
    %45 = vector.shape_cast %44 : vector<1x8x256xf32> to vector<8x256xf32>
    %c2_44 = arith.constant 2 : index
    %c0_45 = arith.constant 0 : index
    %c0_46 = arith.constant 0 : index
    %46 = vector.load %arg2[%c2_44, %c0_45, %c0_46] : memref<3x1x256xf32, #tpu.memory_space<vmem>>, vector<1x1x256xf32>
    %47 = vector.shape_cast %46 : vector<1x1x256xf32> to vector<1x256xf32>
    %48 = vector.broadcast %47 : vector<1x256xf32> to vector<8x256xf32>
    %49 = arith.mulf %45, %48 : vector<8x256xf32>
    %c64 = arith.constant 64 : index
    %c0_47 = arith.constant 0 : index
    %50 = vector.load %arg4[%c64, %c0_47] : memref<72x512xf32, #tpu.memory_space<vmem>>, vector<8x256xf32>
    tpu.vector_store %arg4[%c64, %c0_47], %49 {strides = array<i32>} : memref<72x512xf32, #tpu.memory_space<vmem>>, vector<8x256xf32>,
    %c1_48 = arith.constant 1 : index
    %c0_49 = arith.constant 0 : index
    %c0_50 = arith.constant 0 : index
    %51 = vector.load %arg0[%c1_48, %c0_49, %c0_50] : memref<2x8x290xf32, #tpu.memory_space<vmem>>, vector<1x8x256xf32>
    %52 = vector.shape_cast %51 : vector<1x8x256xf32> to vector<8x256xf32>
    %c0_51 = arith.constant 0 : index
    %c0_52 = arith.constant 0 : index
    %c0_53 = arith.constant 0 : index
    %53 = vector.load %arg2[%c0_51, %c0_52, %c0_53] : memref<3x1x256xf32, #tpu.memory_space<vmem>>, vector<1x1x256xf32>
    %54 = vector.shape_cast %53 : vector<1x1x256xf32> to vector<1x256xf32>
    %55 = vector.broadcast %54 : vector<1x256xf32> to vector<8x256xf32>
    %56 = arith.mulf %52, %55 : vector<8x256xf32>
    %c0_54 = arith.constant 0 : index
    %c256 = arith.constant 256 : index
    %57 = vector.load %arg4[%c0_54, %c256] : memref<72x512xf32, #tpu.memory_space<vmem>>, vector<8x256xf32>
    tpu.vector_store %arg4[%c0_54, %c256], %56 {strides = array<i32>} : memref<72x512xf32, #tpu.memory_space<vmem>>, vector<8x256xf32>,
    %c1_55 = arith.constant 1 : index
    %c0_56 = arith.constant 0 : index
    %c1_57 = arith.constant 1 : index
    %58 = vector.load %arg0[%c1_55, %c0_56, %c1_57] : memref<2x8x290xf32, #tpu.memory_space<vmem>>, vector<1x8x256xf32>
    %59 = vector.shape_cast %58 : vector<1x8x256xf32> to vector<8x256xf32>
    %c8_58 = arith.constant 8 : index
    %c256_59 = arith.constant 256 : index
    %60 = vector.load %arg4[%c8_58, %c256_59] : memref<72x512xf32, #tpu.memory_space<vmem>>, vector<8x256xf32>
    tpu.vector_store %arg4[%c8_58, %c256_59], %59 {strides = array<i32>} : memref<72x512xf32, #tpu.memory_space<vmem>>, vector<8x256xf32>,
    %c1_60 = arith.constant 1 : index
    %c0_61 = arith.constant 0 : index
    %c2_62 = arith.constant 2 : index
    %61 = vector.load %arg0[%c1_60, %c0_61, %c2_62] : memref<2x8x290xf32, #tpu.memory_space<vmem>>, vector<1x8x256xf32>
    %62 = vector.shape_cast %61 : vector<1x8x256xf32> to vector<8x256xf32>
    %c2_63 = arith.constant 2 : index
    %c0_64 = arith.constant 0 : index
    %c0_65 = arith.constant 0 : index
    %63 = vector.load %arg2[%c2_63, %c0_64, %c0_65] : memref<3x1x256xf32, #tpu.memory_space<vmem>>, vector<1x1x256xf32>
    %64 = vector.shape_cast %63 : vector<1x1x256xf32> to vector<1x256xf32>
    %65 = vector.broadcast %64 : vector<1x256xf32> to vector<8x256xf32>
    %66 = arith.mulf %62, %65 : vector<8x256xf32>
    %c16_66 = arith.constant 16 : index
    %c256_67 = arith.constant 256 : index
    %67 = vector.load %arg4[%c16_66, %c256_67] : memref<72x512xf32, #tpu.memory_space<vmem>>, vector<8x256xf32>
    tpu.vector_store %arg4[%c16_66, %c256_67], %66 {strides = array<i32>} : memref<72x512xf32, #tpu.memory_space<vmem>>, vector<8x256xf32>,
    %c1_68 = arith.constant 1 : index
    %c0_69 = arith.constant 0 : index
    %c16_70 = arith.constant 16 : index
    %68 = vector.load %arg0[%c1_68, %c0_69, %c16_70] : memref<2x8x290xf32, #tpu.memory_space<vmem>>, vector<1x8x256xf32>
    %69 = vector.shape_cast %68 : vector<1x8x256xf32> to vector<8x256xf32>
    %c0_71 = arith.constant 0 : index
    %c0_72 = arith.constant 0 : index
    %c0_73 = arith.constant 0 : index
    %70 = vector.load %arg2[%c0_71, %c0_72, %c0_73] : memref<3x1x256xf32, #tpu.memory_space<vmem>>, vector<1x1x256xf32>
    %71 = vector.shape_cast %70 : vector<1x1x256xf32> to vector<1x256xf32>
    %72 = vector.broadcast %71 : vector<1x256xf32> to vector<8x256xf32>
    %73 = arith.mulf %69, %72 : vector<8x256xf32>
    %c24_74 = arith.constant 24 : index
    %c256_75 = arith.constant 256 : index
    %74 = vector.load %arg4[%c24_74, %c256_75] : memref<72x512xf32, #tpu.memory_space<vmem>>, vector<8x256xf32>
    tpu.vector_store %arg4[%c24_74, %c256_75], %73 {strides = array<i32>} : memref<72x512xf32, #tpu.memory_space<vmem>>, vector<8x256xf32>,
    %c1_76 = arith.constant 1 : index
    %c0_77 = arith.constant 0 : index
    %c17_78 = arith.constant 17 : index
    %75 = vector.load %arg0[%c1_76, %c0_77, %c17_78] : memref<2x8x290xf32, #tpu.memory_space<vmem>>, vector<1x8x256xf32>
    %76 = vector.shape_cast %75 : vector<1x8x256xf32> to vector<8x256xf32>
    %c32_79 = arith.constant 32 : index
    %c256_80 = arith.constant 256 : index
    %77 = vector.load %arg4[%c32_79, %c256_80] : memref<72x512xf32, #tpu.memory_space<vmem>>, vector<8x256xf32>
    tpu.vector_store %arg4[%c32_79, %c256_80], %76 {strides = array<i32>} : memref<72x512xf32, #tpu.memory_space<vmem>>, vector<8x256xf32>,
    %c1_81 = arith.constant 1 : index
    %c0_82 = arith.constant 0 : index
    %c18_83 = arith.constant 18 : index
    %78 = vector.load %arg0[%c1_81, %c0_82, %c18_83] : memref<2x8x290xf32, #tpu.memory_space<vmem>>, vector<1x8x256xf32>
    %79 = vector.shape_cast %78 : vector<1x8x256xf32> to vector<8x256xf32>
    %c2_84 = arith.constant 2 : index
    %c0_85 = arith.constant 0 : index
    %c0_86 = arith.constant 0 : index
    %80 = vector.load %arg2[%c2_84, %c0_85, %c0_86] : memref<3x1x256xf32, #tpu.memory_space<vmem>>, vector<1x1x256xf32>
    %81 = vector.shape_cast %80 : vector<1x1x256xf32> to vector<1x256xf32>
    %82 = vector.broadcast %81 : vector<1x256xf32> to vector<8x256xf32>
    %83 = arith.mulf %79, %82 : vector<8x256xf32>
    %c40_87 = arith.constant 40 : index
    %c256_88 = arith.constant 256 : index
    %84 = vector.load %arg4[%c40_87, %c256_88] : memref<72x512xf32, #tpu.memory_space<vmem>>, vector<8x256xf32>
    tpu.vector_store %arg4[%c40_87, %c256_88], %83 {strides = array<i32>} : memref<72x512xf32, #tpu.memory_space<vmem>>, vector<8x256xf32>,
    %c1_89 = arith.constant 1 : index
    %c0_90 = arith.constant 0 : index
    %c32_91 = arith.constant 32 : index
    %85 = vector.load %arg0[%c1_89, %c0_90, %c32_91] : memref<2x8x290xf32, #tpu.memory_space<vmem>>, vector<1x8x256xf32>
    %86 = vector.shape_cast %85 : vector<1x8x256xf32> to vector<8x256xf32>
    %c0_92 = arith.constant 0 : index
    %c0_93 = arith.constant 0 : index
    %c0_94 = arith.constant 0 : index
    %87 = vector.load %arg2[%c0_92, %c0_93, %c0_94] : memref<3x1x256xf32, #tpu.memory_space<vmem>>, vector<1x1x256xf32>
    %88 = vector.shape_cast %87 : vector<1x1x256xf32> to vector<1x256xf32>
    %89 = vector.broadcast %88 : vector<1x256xf32> to vector<8x256xf32>
    %90 = arith.mulf %86, %89 : vector<8x256xf32>
    %c48_95 = arith.constant 48 : index
    %c256_96 = arith.constant 256 : index
    %91 = vector.load %arg4[%c48_95, %c256_96] : memref<72x512xf32, #tpu.memory_space<vmem>>, vector<8x256xf32>
    tpu.vector_store %arg4[%c48_95, %c256_96], %90 {strides = array<i32>} : memref<72x512xf32, #tpu.memory_space<vmem>>, vector<8x256xf32>,
    %c1_97 = arith.constant 1 : index
    %c0_98 = arith.constant 0 : index
    %c33_99 = arith.constant 33 : index
    %92 = vector.load %arg0[%c1_97, %c0_98, %c33_99] : memref<2x8x290xf32, #tpu.memory_space<vmem>>, vector<1x8x256xf32>
    %93 = vector.shape_cast %92 : vector<1x8x256xf32> to vector<8x256xf32>
    %c56_100 = arith.constant 56 : index
    %c256_101 = arith.constant 256 : index
    %94 = vector.load %arg4[%c56_100, %c256_101] : memref<72x512xf32, #tpu.memory_space<vmem>>, vector<8x256xf32>
    tpu.vector_store %arg4[%c56_100, %c256_101], %93 {strides = array<i32>} : memref<72x512xf32, #tpu.memory_space<vmem>>, vector<8x256xf32>,
    %c1_102 = arith.constant 1 : index
    %c0_103 = arith.constant 0 : index
    %c34_104 = arith.constant 34 : index
    %95 = vector.load %arg0[%c1_102, %c0_103, %c34_104] : memref<2x8x290xf32, #tpu.memory_space<vmem>>, vector<1x8x256xf32>
    %96 = vector.shape_cast %95 : vector<1x8x256xf32> to vector<8x256xf32>
    %c2_105 = arith.constant 2 : index
    %c0_106 = arith.constant 0 : index
    %c0_107 = arith.constant 0 : index
    %97 = vector.load %arg2[%c2_105, %c0_106, %c0_107] : memref<3x1x256xf32, #tpu.memory_space<vmem>>, vector<1x1x256xf32>
    %98 = vector.shape_cast %97 : vector<1x1x256xf32> to vector<1x256xf32>
    %99 = vector.broadcast %98 : vector<1x256xf32> to vector<8x256xf32>
    %100 = arith.mulf %96, %99 : vector<8x256xf32>
    %c64_108 = arith.constant 64 : index
    %c256_109 = arith.constant 256 : index
    %101 = vector.load %arg4[%c64_108, %c256_109] : memref<72x512xf32, #tpu.memory_space<vmem>>, vector<8x256xf32>
    tpu.vector_store %arg4[%c64_108, %c256_109], %100 {strides = array<i32>} : memref<72x512xf32, #tpu.memory_space<vmem>>, vector<8x256xf32>,
    %c0_110 = arith.constant 0 : index
    %c0_111 = arith.constant 0 : index
    %102 = vector.load %arg1[%c0_110, %c0_111] : memref<8x72xf32, #tpu.memory_space<vmem>>, vector<8x72xf32>
    %c0_112 = arith.constant 0 : index
    %c0_113 = arith.constant 0 : index
    %103 = vector.load %arg4[%c0_112, %c0_113] : memref<72x512xf32, #tpu.memory_space<vmem>>, vector<72x512xf32>
    %cst = arith.constant dense<0.000000e+00> : vector<8x512xf32>
    %104 = tpu.matmul %102, %103, %cst {dimension_numbers = #tpu.dot_dimension_numbers<[1], [0], [0], [1], [0, 0, 1, 1], [], []>} : vector<8x72xf32>, vector<72x512xf32>, vector<8x512xf32> -> vector<8x512xf32>
    %cst_114 = arith.constant 0.000000e+00 : f32
    %105 = vector.broadcast %cst_114 : f32 to vector<8x512xf32>
    %106 = arith.subf %105, %104 : vector<8x512xf32>
    %107 = math.exp %106 : vector<8x512xf32>
    %cst_115 = arith.constant 1.000000e+00 : f32
    %108 = vector.broadcast %cst_115 : f32 to vector<8x512xf32>
    %109 = arith.addf %108, %107 : vector<8x512xf32>
    %110 = tpu.reciprocal %109 : vector<8x512xf32> -> vector<8x512xf32>
    %111 = arith.mulf %104, %110 : vector<8x512xf32>
    %112 = vector.extract_strided_slice %111 {offsets = [0, 0], sizes = [8, 256], strides = [1, 1]} : vector<8x512xf32> to vector<8x256xf32>
    %c0_116 = arith.constant 0 : index
    %c0_117 = arith.constant 0 : index
    %c0_118 = arith.constant 0 : index
    %113 = vector.load %arg3[%c0_116, %c0_117, %c0_118] : memref<2x8x256xf32, #tpu.memory_space<vmem>>, vector<1x8x256xf32>
    %114 = vector.shape_cast %113 : vector<1x8x256xf32> to vector<8x256xf32>
    %115 = vector.shape_cast %112 : vector<8x256xf32> to vector<1x8x256xf32>
    tpu.vector_store %arg3[%c0_116, %c0_117, %c0_118], %115 {strides = array<i32>} : memref<2x8x256xf32, #tpu.memory_space<vmem>>, vector<1x8x256xf32>,
    %116 = vector.extract_strided_slice %111 {offsets = [0, 256], sizes = [8, 256], strides = [1, 1]} : vector<8x512xf32> to vector<8x256xf32>
    %c1_119 = arith.constant 1 : index
    %c0_120 = arith.constant 0 : index
    %c0_121 = arith.constant 0 : index
    %117 = vector.load %arg3[%c1_119, %c0_120, %c0_121] : memref<2x8x256xf32, #tpu.memory_space<vmem>>, vector<1x8x256xf32>
    %118 = vector.shape_cast %117 : vector<1x8x256xf32> to vector<8x256xf32>
    %119 = vector.shape_cast %116 : vector<8x256xf32> to vector<1x8x256xf32>
    tpu.vector_store %arg3[%c1_119, %c0_120, %c0_121], %119 {strides = array<i32>} : memref<2x8x256xf32, #tpu.memory_space<vmem>>, vector<1x8x256xf32>,
    return
  }
}

</mosaic_0001>

<llo_original>
// kernel: conv_bn_silu.1
$region0: #{conv_bn_silu.1}
  #allocation0 [shape = 'u32[]', space=smem, size = 0x4, offset = 0x4, fixed_abs, tag = 'smem constant byte address 0x4 - core index']
  #allocation1 [shape = 'u32[144,128]{1,0:T(1,128)}', space=vmem, size = 0x12000, scoped, tag = 'internal scratch']
  #allocation2 [shape = 'f32[72,512]{1,0:T(8,128)}', space=vmem, size = 0x24000, scoped, tag = 'scratch operand']
  %s0 = inlined_call_operand.vmem [shape: f32[2,8,290], index: 0, kind: input, shape index: {}]
  %s1 = inlined_call_operand.vmem [shape: f32[8,72], index: 1, kind: input, shape index: {}]
  %s2 = inlined_call_operand.vmem [shape: f32[3,1,256], index: 2, kind: input, shape index: {}]
  %s3 = inlined_call_operand.vmem [shape: f32[2,8,256], index: 3, kind: output, shape index: {}]
  %s4 = sld [smem:[#allocation0]]
  $region22: #{conv_bn_silu.1} parent=0
    _
  %s6 = ssub.s32 1, %s4
  %s7 = scalar_select 0, %s6, %s4
  // Predicated region
  $region2: #{conv_bn_silu.1} parent=0 // pred_check
    _
  $region3: #{conv_bn_silu.1} parent=0 // pred_check_branch
    %9 = sbr.rel (0) target = $region5
  $region4: #{conv_bn_silu.1} parent=0 // pred_region
    _
  $region5: #{conv_bn_silu.1} parent=0 // pred_fallthru
    _
  // Predicated region
  $region6: #{conv_bn_silu.1} parent=0 // pred_check
    _
  $region7: #{conv_bn_silu.1} parent=0 // pred_check_branch
    %11 = sbr.rel (0) target = $region9
  $region8: #{conv_bn_silu.1} parent=0 // pred_region
    _
  $region9: #{conv_bn_silu.1} parent=0 // pred_fallthru
    _
  // Predicated region
  $region10: #{conv_bn_silu.1} parent=0 // pred_check
    _
  $region11: #{conv_bn_silu.1} parent=0 // pred_check_branch
    %13 = sbr.rel (0) target = $region13
  $region12: #{conv_bn_silu.1} parent=0 // pred_region
    _
  $region13: #{conv_bn_silu.1} parent=0 // pred_fallthru
    _
  %v14 = vld [vmem:[%s0] sm:$0xff]
  %v15 = vld [vmem:[%s0 + $0x8] sm:$0xff]
  %v16 = vld [vmem:[%s2] sm:$0x3]
  %v18 = vlaneseq
  %v19 = vshrl.u32 %v18, 7
  %v20 = vsub.s32 0, %v19
  %v21 = vrot.slane %v16, %v20
  %v22 = vlaneseq
  %v23 = vshrl.u32 %v22, 7
  %v24 = vsub.s32 1, %v23
  %v25 = vrot.slane %v16, %v24
  %v28 = vmul.f32 %v14, %v21
  %v29 = vmul.f32 %v15, %v25
  %30 = vst [vmem:[#allocation2] sm:$0xff] %v28
  %31 = vst [vmem:[#allocation2 + $0x8] sm:$0xff] %v29
  %v32 = vld [vmem:[%s0] sm:$0xff]
  %v33 = vld [vmem:[%s0 + $0x8] sm:$0xff]
  %v34 = vld [vmem:[%s0 + $0x10] sm:$0xff]
  %38 = vrot.lane.b32.xlu0 %v32, 127
  %v39 = vpop.permute.xlu0 %38
  %40 = vrot.lane.b32.xlu0 %v33, 127
  %v41 = vpop.permute.xlu0 %40
  %42 = vrot.lane.b32.xlu0 %v34, 127
  %v43 = vpop.permute.xlu0 %42
  %vm44 = vcmask 1039360
  %v45 = vsel %vm44, %v39, %v41
  %v46 = vsel %vm44, %v41, %v43
  %49 = vst [vmem:[#allocation2 + $0x20] sm:$0xff] %v45
  %50 = vst [vmem:[#allocation2 + $0x28] sm:$0xff] %v46
  %v51 = vld [vmem:[%s0] sm:$0xff]
  %v52 = vld [vmem:[%s0 + $0x8] sm:$0xff]
  %v53 = vld [vmem:[%s0 + $0x10] sm:$0xff]
  %s54 = scalar_lea.vmem %s2, 4
  %v55 = vld [vmem:[%s54] sm:$0x3]
  %v57 = vlaneseq
  %v58 = vshrl.u32 %v57, 7
  %v59 = vsub.s32 0, %v58
  %v60 = vrot.slane %v55, %v59
  %v61 = vlaneseq
  %v62 = vshrl.u32 %v61, 7
  %v63 = vsub.s32 1, %v62
  %v64 = vrot.slane %v55, %v63
  %65 = vrot.lane.b32.xlu0 %v60, 2
  %v66 = vpop.permute.xlu0 %65
  %67 = vrot.lane.b32.xlu0 %v64, 2
  %v68 = vpop.permute.xlu0 %67
  %vm69 = vcmask 15360
  %v70 = vsel %vm69, %v66, %v68
  %v74 = vmul.f32 %v51, %v66
  %v75 = vmul.f32 %v52, %v70
  %v76 = vmul.f32 %v53, %v68
  %80 = vrot.lane.b32.xlu0 %v74, 126
  %v81 = vpop.permute.xlu0 %80
  %82 = vrot.lane.b32.xlu0 %v75, 126
  %v83 = vpop.permute.xlu0 %82
  %84 = vrot.lane.b32.xlu0 %v76, 126
  %v85 = vpop.permute.xlu0 %84
  %vm86 = vcmask 1031168
  %v87 = vsel %vm86, %v81, %v83
  %v88 = vsel %vm86, %v83, %v85
  %91 = vst [vmem:[#allocation2 + $0x40] sm:$0xff] %v87
  %92 = vst [vmem:[#allocation2 + $0x48] sm:$0xff] %v88
  %v93 = vld [vmem:[%s0] sm:$0xff]
  %v94 = vld [vmem:[%s0 + $0x8] sm:$0xff]
  %v95 = vld [vmem:[%s0 + $0x10] sm:$0xff]
  %v96 = vld [vmem:[%s2] sm:$0x3]
  %v98 = vlaneseq
  %v99 = vshrl.u32 %v98, 7
  %v100 = vsub.s32 0, %v99
  %v101 = vrot.slane %v96, %v100
  %v102 = vlaneseq
  %v103 = vshrl.u32 %v102, 7
  %v104 = vsub.s32 1, %v103
  %v105 = vrot.slane %v96, %v104
  %106 = vrot.lane.b32.xlu0 %v101, 16
  %v107 = vpop.permute.xlu0 %106
  %108 = vrot.lane.b32.xlu0 %v105, 16
  %v109 = vpop.permute.xlu0 %108
  %vm110 = vcmask 130048
  %v111 = vsel %vm110, %v107, %v109
  %v115 = vmul.f32 %v93, %v107
  %v116 = vmul.f32 %v94, %v111
  %v117 = vmul.f32 %v95, %v109
  %121 = vrot.lane.b32.xlu0 %v115, 112
  %v122 = vpop.permute.xlu0 %121
  %123 = vrot.lane.b32.xlu0 %v116, 112
  %v124 = vpop.permute.xlu0 %123
  %125 = vrot.lane.b32.xlu0 %v117, 112
  %v126 = vpop.permute.xlu0 %125
  %vm127 = vcmask 916480
  %v128 = vsel %vm127, %v122, %v124
  %v129 = vsel %vm127, %v124, %v126
  %132 = vst [vmem:[#allocation2 + $0x60] sm:$0xff] %v128
  %133 = vst [vmem:[#allocation2 + $0x68] sm:$0xff] %v129
  %v134 = vld [vmem:[%s0] sm:$0xff]
  %v135 = vld [vmem:[%s0 + $0x8] sm:$0xff]
  %v136 = vld [vmem:[%s0 + $0x10] sm:$0xff]
  %140 = vrot.lane.b32.xlu0 %v134, 111
  %v141 = vpop.permute.xlu0 %140
  %142 = vrot.lane.b32.xlu0 %v135, 111
  %v143 = vpop.permute.xlu0 %142
  %144 = vrot.lane.b32.xlu0 %v136, 111
  %v145 = vpop.permute.xlu0 %144
  %vm146 = vcmask 908288
  %v147 = vsel %vm146, %v141, %v143
  %v148 = vsel %vm146, %v143, %v145
  %151 = vst [vmem:[#allocation2 + $0x80] sm:$0xff] %v147
  %152 = vst [vmem:[#allocation2 + $0x88] sm:$0xff] %v148
  %v153 = vld [vmem:[%s0] sm:$0xff]
  %v154 = vld [vmem:[%s0 + $0x8] sm:$0xff]
  %v155 = vld [vmem:[%s0 + $0x10] sm:$0xff]
  %v156 = vld [vmem:[%s54] sm:$0x3]
  %v158 = vlaneseq
  %v159 = vshrl.u32 %v158, 7
  %v160 = vsub.s32 0, %v159
  %v161 = vrot.slane %v156, %v160
  %v162 = vlaneseq
  %v163 = vshrl.u32 %v162, 7
  %v164 = vsub.s32 1, %v163
  %v165 = vrot.slane %v156, %v164
  %166 = vrot.lane.b32.xlu0 %v161, 18
  %v167 = vpop.permute.xlu0 %166
  %168 = vrot.lane.b32.xlu0 %v165, 18
  %v169 = vpop.permute.xlu0 %168
  %vm170 = vcmask 146432
  %v171 = vsel %vm170, %v167, %v169
  %v175 = vmul.f32 %v153, %v167
  %v176 = vmul.f32 %v154, %v171
  %v177 = vmul.f32 %v155, %v169
  %181 = vrot.lane.b32.xlu0 %v175, 110
  %v182 = vpop.permute.xlu0 %181
  %183 = vrot.lane.b32.xlu0 %v176, 110
  %v184 = vpop.permute.xlu0 %183
  %185 = vrot.lane.b32.xlu0 %v177, 110
  %v186 = vpop.permute.xlu0 %185
  %vm187 = vcmask 900096
  %v188 = vsel %vm187, %v182, %v184
  %v189 = vsel %vm187, %v184, %v186
  %192 = vst [vmem:[#allocation2 + $0xa0] sm:$0xff] %v188
  %193 = vst [vmem:[#allocation2 + $0xa8] sm:$0xff] %v189
  %v194 = vld [vmem:[%s0] sm:$0xff]
  %v195 = vld [vmem:[%s0 + $0x8] sm:$0xff]
  %v196 = vld [vmem:[%s0 + $0x10] sm:$0xff]
  %v197 = vld [vmem:[%s2] sm:$0x3]
  %v199 = vlaneseq
  %v200 = vshrl.u32 %v199, 7
  %v201 = vsub.s32 0, %v200
  %v202 = vrot.slane %v197, %v201
  %v203 = vlaneseq
  %v204 = vshrl.u32 %v203, 7
  %v205 = vsub.s32 1, %v204
  %v206 = vrot.slane %v197, %v205
  %207 = vrot.lane.b32.xlu0 %v202, 32
  %v208 = vpop.permute.xlu0 %207
  %209 = vrot.lane.b32.xlu0 %v206, 32
  %v210 = vpop.permute.xlu0 %209
  %vm211 = vcmask 261120
  %v212 = vsel %vm211, %v208, %v210
  %v216 = vmul.f32 %v194, %v208
  %v217 = vmul.f32 %v195, %v212
  %v218 = vmul.f32 %v196, %v210
  %222 = vrot.lane.b32.xlu0 %v216, 96
  %v223 = vpop.permute.xlu0 %222
  %224 = vrot.lane.b32.xlu0 %v217, 96
  %v225 = vpop.permute.xlu0 %224
  %226 = vrot.lane.b32.xlu0 %v218, 96
  %v227 = vpop.permute.xlu0 %226
  %vm228 = vcmask 785408
  %v229 = vsel %vm228, %v223, %v225
  %v230 = vsel %vm228, %v225, %v227
  %233 = vst [vmem:[#allocation2 + $0xc0] sm:$0xff] %v229
  %234 = vst [vmem:[#allocation2 + $0xc8] sm:$0xff] %v230
  %v235 = vld [vmem:[%s0] sm:$0xff]
  %v236 = vld [vmem:[%s0 + $0x8] sm:$0xff]
  %v237 = vld [vmem:[%s0 + $0x10] sm:$0xff]
  %241 = vrot.lane.b32.xlu0 %v235, 95
  %v242 = vpop.permute.xlu0 %241
  %243 = vrot.lane.b32.xlu0 %v236, 95
  %v244 = vpop.permute.xlu0 %243
  %245 = vrot.lane.b32.xlu0 %v237, 95
  %v246 = vpop.permute.xlu0 %245
  %vm247 = vcmask 777216
  %v248 = vsel %vm247, %v242, %v244
  %v249 = vsel %vm247, %v244, %v246
  %252 = vst [vmem:[#allocation2 + $0xe0] sm:$0xff] %v248
  %253 = vst [vmem:[#allocation2 + $0xe8] sm:$0xff] %v249
  %v254 = vld [vmem:[%s0] sm:$0xff]
  %v255 = vld [vmem:[%s0 + $0x8] sm:$0xff]
  %v256 = vld [vmem:[%s0 + $0x10] sm:$0xff]
  %v257 = vld [vmem:[%s54] sm:$0x3]
  %v259 = vlaneseq
  %v260 = vshrl.u32 %v259, 7
  %v261 = vsub.s32 0, %v260
  %v262 = vrot.slane %v257, %v261
  %v263 = vlaneseq
  %v264 = vshrl.u32 %v263, 7
  %v265 = vsub.s32 1, %v264
  %v266 = vrot.slane %v257, %v265
  %267 = vrot.lane.b32.xlu0 %v262, 34
  %v268 = vpop.permute.xlu0 %267
  %269 = vrot.lane.b32.xlu0 %v266, 34
  %v270 = vpop.permute.xlu0 %269
  %vm271 = vcmask 277504
  %v272 = vsel %vm271, %v268, %v270
  %v276 = vmul.f32 %v254, %v268
  %v277 = vmul.f32 %v255, %v272
  %v278 = vmul.f32 %v256, %v270
  %282 = vrot.lane.b32.xlu0 %v276, 94
  %v283 = vpop.permute.xlu0 %282
  %284 = vrot.lane.b32.xlu0 %v277, 94
  %v285 = vpop.permute.xlu0 %284
  %286 = vrot.lane.b32.xlu0 %v278, 94
  %v287 = vpop.permute.xlu0 %286
  %vm288 = vcmask 769024
  %v289 = vsel %vm288, %v283, %v285
  %v290 = vsel %vm288, %v285, %v287
  %293 = vst [vmem:[#allocation2 + $0x100] sm:$0xff] %v289
  %294 = vst [vmem:[#allocation2 + $0x108] sm:$0xff] %v290
  %s295 = scalar_lea.vmem %s0, 24
  %v296 = vld [vmem:[%s295] sm:$0xff]
  %v297 = vld [vmem:[%s295 + $0x8] sm:$0xff]
  %v298 = vld [vmem:[%s2] sm:$0x3]
  %v300 = vlaneseq
  %v301 = vshrl.u32 %v300, 7
  %v302 = vsub.s32 0, %v301
  %v303 = vrot.slane %v298, %v302
  %v304 = vlaneseq
  %v305 = vshrl.u32 %v304, 7
  %v306 = vsub.s32 1, %v305
  %v307 = vrot.slane %v298, %v306
  %v310 = vmul.f32 %v296, %v303
  %v311 = vmul.f32 %v297, %v307
  %312 = vst [vmem:[#allocation2 + $0x10] sm:$0xff] %v310
  %313 = vst [vmem:[#allocation2 + $0x18] sm:$0xff] %v311
  %v314 = vld [vmem:[%s295] sm:$0xff]
  %v315 = vld [vmem:[%s295 + $0x8] sm:$0xff]
  %v316 = vld [vmem:[%s295 + $0x10] sm:$0xff]
  %320 = vrot.lane.b32.xlu0 %v314, 127
  %v321 = vpop.permute.xlu0 %320
  %322 = vrot.lane.b32.xlu0 %v315, 127
  %v323 = vpop.permute.xlu0 %322
  %324 = vrot.lane.b32.xlu0 %v316, 127
  %v325 = vpop.permute.xlu0 %324
  %v326 = vsel %vm44, %v321, %v323
  %v327 = vsel %vm44, %v323, %v325
  %330 = vst [vmem:[#allocation2 + $0x30] sm:$0xff] %v326
  %331 = vst [vmem:[#allocation2 + $0x38] sm:$0xff] %v327
  %v332 = vld [vmem:[%s295] sm:$0xff]
  %v333 = vld [vmem:[%s295 + $0x8] sm:$0xff]
  %v334 = vld [vmem:[%s295 + $0x10] sm:$0xff]
  %v335 = vld [vmem:[%s54] sm:$0x3]
  %v337 = vlaneseq
  %v338 = vshrl.u32 %v337, 7
  %v339 = vsub.s32 0, %v338
  %v340 = vrot.slane %v335, %v339
  %v341 = vlaneseq
  %v342 = vshrl.u32 %v341, 7
  %v343 = vsub.s32 1, %v342
  %v344 = vrot.slane %v335, %v343
  %345 = vrot.lane.b32.xlu0 %v340, 2
  %v346 = vpop.permute.xlu0 %345
  %347 = vrot.lane.b32.xlu0 %v344, 2
  %v348 = vpop.permute.xlu0 %347
  %v349 = vsel %vm69, %v346, %v348
  %v353 = vmul.f32 %v332, %v346
  %v354 = vmul.f32 %v333, %v349
  %v355 = vmul.f32 %v334, %v348
  %359 = vrot.lane.b32.xlu0 %v353, 126
  %v360 = vpop.permute.xlu0 %359
  %361 = vrot.lane.b32.xlu0 %v354, 126
  %v362 = vpop.permute.xlu0 %361
  %363 = vrot.lane.b32.xlu0 %v355, 126
  %v364 = vpop.permute.xlu0 %363
  %v365 = vsel %vm86, %v360, %v362
  %v366 = vsel %vm86, %v362, %v364
  %369 = vst [vmem:[#allocation2 + $0x50] sm:$0xff] %v365
  %370 = vst [vmem:[#allocation2 + $0x58] sm:$0xff] %v366
  %v371 = vld [vmem:[%s295] sm:$0xff]
  %v372 = vld [vmem:[%s295 + $0x8] sm:$0xff]
  %v373 = vld [vmem:[%s295 + $0x10] sm:$0xff]
  %v374 = vld [vmem:[%s2] sm:$0x3]
  %v376 = vlaneseq
  %v377 = vshrl.u32 %v376, 7
  %v378 = vsub.s32 0, %v377
  %v379 = vrot.slane %v374, %v378
  %v380 = vlaneseq
  %v381 = vshrl.u32 %v380, 7
  %v382 = vsub.s32 1, %v381
  %v383 = vrot.slane %v374, %v382
  %384 = vrot.lane.b32.xlu0 %v379, 16
  %v385 = vpop.permute.xlu0 %384
  %386 = vrot.lane.b32.xlu0 %v383, 16
  %v387 = vpop.permute.xlu0 %386
  %v388 = vsel %vm110, %v385, %v387
  %v392 = vmul.f32 %v371, %v385
  %v393 = vmul.f32 %v372, %v388
  %v394 = vmul.f32 %v373, %v387
  %398 = vrot.lane.b32.xlu0 %v392, 112
  %v399 = vpop.permute.xlu0 %398
  %400 = vrot.lane.b32.xlu0 %v393, 112
  %v401 = vpop.permute.xlu0 %400
  %402 = vrot.lane.b32.xlu0 %v394, 112
  %v403 = vpop.permute.xlu0 %402
  %v404 = vsel %vm127, %v399, %v401
  %v405 = vsel %vm127, %v401, %v403
  %408 = vst [vmem:[#allocation2 + $0x70] sm:$0xff] %v404
  %409 = vst [vmem:[#allocation2 + $0x78] sm:$0xff] %v405
  %v410 = vld [vmem:[%s295] sm:$0xff]
  %v411 = vld [vmem:[%s295 + $0x8] sm:$0xff]
  %v412 = vld [vmem:[%s295 + $0x10] sm:$0xff]
  %416 = vrot.lane.b32.xlu0 %v410, 111
  %v417 = vpop.permute.xlu0 %416
  %418 = vrot.lane.b32.xlu0 %v411, 111
  %v419 = vpop.permute.xlu0 %418
  %420 = vrot.lane.b32.xlu0 %v412, 111
  %v421 = vpop.permute.xlu0 %420
  %v422 = vsel %vm146, %v417, %v419
  %v423 = vsel %vm146, %v419, %v421
  %426 = vst [vmem:[#allocation2 + $0x90] sm:$0xff] %v422
  %427 = vst [vmem:[#allocation2 + $0x98] sm:$0xff] %v423
  %v428 = vld [vmem:[%s295] sm:$0xff]
  %v429 = vld [vmem:[%s295 + $0x8] sm:$0xff]
  %v430 = vld [vmem:[%s295 + $0x10] sm:$0xff]
  %v431 = vld [vmem:[%s54] sm:$0x3]
  %v433 = vlaneseq
  %v434 = vshrl.u32 %v433, 7
  %v435 = vsub.s32 0, %v434
  %v436 = vrot.slane %v431, %v435
  %v437 = vlaneseq
  %v438 = vshrl.u32 %v437, 7
  %v439 = vsub.s32 1, %v438
  %v440 = vrot.slane %v431, %v439
  %441 = vrot.lane.b32.xlu0 %v436, 18
  %v442 = vpop.permute.xlu0 %441
  %443 = vrot.lane.b32.xlu0 %v440, 18
  %v444 = vpop.permute.xlu0 %443
  %v445 = vsel %vm170, %v442, %v444
  %v449 = vmul.f32 %v428, %v442
  %v450 = vmul.f32 %v429, %v445
  %v451 = vmul.f32 %v430, %v444
  %455 = vrot.lane.b32.xlu0 %v449, 110
  %v456 = vpop.permute.xlu0 %455
  %457 = vrot.lane.b32.xlu0 %v450, 110
  %v458 = vpop.permute.xlu0 %457
  %459 = vrot.lane.b32.xlu0 %v451, 110
  %v460 = vpop.permute.xlu0 %459
  %v461 = vsel %vm187, %v456, %v458
  %v462 = vsel %vm187, %v458, %v460
  %465 = vst [vmem:[#allocation2 + $0xb0] sm:$0xff] %v461
  %466 = vst [vmem:[#allocation2 + $0xb8] sm:$0xff] %v462
  %v467 = vld [vmem:[%s295] sm:$0xff]
  %v468 = vld [vmem:[%s295 + $0x8] sm:$0xff]
  %v469 = vld [vmem:[%s295 + $0x10] sm:$0xff]
  %v470 = vld [vmem:[%s2] sm:$0x3]
  %v472 = vlaneseq
  %v473 = vshrl.u32 %v472, 7
  %v474 = vsub.s32 0, %v473
  %v475 = vrot.slane %v470, %v474
  %v476 = vlaneseq
  %v477 = vshrl.u32 %v476, 7
  %v478 = vsub.s32 1, %v477
  %v479 = vrot.slane %v470, %v478
  %480 = vrot.lane.b32.xlu0 %v475, 32
  %v481 = vpop.permute.xlu0 %480
  %482 = vrot.lane.b32.xlu0 %v479, 32
  %v483 = vpop.permute.xlu0 %482
  %v484 = vsel %vm211, %v481, %v483
  %v488 = vmul.f32 %v467, %v481
  %v489 = vmul.f32 %v468, %v484
  %v490 = vmul.f32 %v469, %v483
  %494 = vrot.lane.b32.xlu0 %v488, 96
  %v495 = vpop.permute.xlu0 %494
  %496 = vrot.lane.b32.xlu0 %v489, 96
  %v497 = vpop.permute.xlu0 %496
  %498 = vrot.lane.b32.xlu0 %v490, 96
  %v499 = vpop.permute.xlu0 %498
  %v500 = vsel %vm228, %v495, %v497
  %v501 = vsel %vm228, %v497, %v499
  %504 = vst [vmem:[#allocation2 + $0xd0] sm:$0xff] %v500
  %505 = vst [vmem:[#allocation2 + $0xd8] sm:$0xff] %v501
  %v506 = vld [vmem:[%s295] sm:$0xff]
  %v507 = vld [vmem:[%s295 + $0x8] sm:$0xff]
  %v508 = vld [vmem:[%s295 + $0x10] sm:$0xff]
  %512 = vrot.lane.b32.xlu0 %v506, 95
  %v513 = vpop.permute.xlu0 %512
  %514 = vrot.lane.b32.xlu0 %v507, 95
  %v515 = vpop.permute.xlu0 %514
  %516 = vrot.lane.b32.xlu0 %v508, 95
  %v517 = vpop.permute.xlu0 %516
  %v518 = vsel %vm247, %v513, %v515
  %v519 = vsel %vm247, %v515, %v517
  %522 = vst [vmem:[#allocation2 + $0xf0] sm:$0xff] %v518
  %523 = vst [vmem:[#allocation2 + $0xf8] sm:$0xff] %v519
  %v524 = vld [vmem:[%s295] sm:$0xff]
  %v525 = vld [vmem:[%s295 + $0x8] sm:$0xff]
  %v526 = vld [vmem:[%s295 + $0x10] sm:$0xff]
  %v527 = vld [vmem:[%s54] sm:$0x3]
  %v529 = vlaneseq
  %v530 = vshrl.u32 %v529, 7
  %v531 = vsub.s32 0, %v530
  %v532 = vrot.slane %v527, %v531
  %v533 = vlaneseq
  %v534 = vshrl.u32 %v533, 7
  %v535 = vsub.s32 1, %v534
  %v536 = vrot.slane %v527, %v535
  %537 = vrot.lane.b32.xlu0 %v532, 34
  %v538 = vpop.permute.xlu0 %537
  %539 = vrot.lane.b32.xlu0 %v536, 34
  %v540 = vpop.permute.xlu0 %539
  %v541 = vsel %vm271, %v538, %v540
  %v545 = vmul.f32 %v524, %v538
  %v546 = vmul.f32 %v525, %v541
  %v547 = vmul.f32 %v526, %v540
  %551 = vrot.lane.b32.xlu0 %v545, 94
  %v552 = vpop.permute.xlu0 %551
  %553 = vrot.lane.b32.xlu0 %v546, 94
  %v554 = vpop.permute.xlu0 %553
  %555 = vrot.lane.b32.xlu0 %v547, 94
  %v556 = vpop.permute.xlu0 %555
  %v557 = vsel %vm288, %v552, %v554
  %v558 = vsel %vm288, %v554, %v556
  %561 = vst [vmem:[#allocation2 + $0x110] sm:$0xff] %v557
  %562 = vst [vmem:[#allocation2 + $0x118] sm:$0xff] %v558
  %v563 = vld [vmem:[%s1] sm:$0xff]
  %v564 = vld [vmem:[#allocation2] sm:$0xff]
  %v565 = vld [vmem:[#allocation2 + $0x8] sm:$0xff]
  %v566 = vld [vmem:[#allocation2 + $0x10] sm:$0xff]
  %v567 = vld [vmem:[#allocation2 + $0x18] sm:$0xff]
  %v568 = vld [vmem:[#allocation2 + $0x20] sm:$0xff]
  %v569 = vld [vmem:[#allocation2 + $0x28] sm:$0xff]
  %v570 = vld [vmem:[#allocation2 + $0x30] sm:$0xff]
  %v571 = vld [vmem:[#allocation2 + $0x38] sm:$0xff]
  %v572 = vld [vmem:[#allocation2 + $0x40] sm:$0xff]
  %v573 = vld [vmem:[#allocation2 + $0x48] sm:$0xff]
  %v574 = vld [vmem:[#allocation2 + $0x50] sm:$0xff]
  %v575 = vld [vmem:[#allocation2 + $0x58] sm:$0xff]
  %v576 = vld [vmem:[#allocation2 + $0x60] sm:$0xff]
  %v577 = vld [vmem:[#allocation2 + $0x68] sm:$0xff]
  %v578 = vld [vmem:[#allocation2 + $0x70] sm:$0xff]
  %v579 = vld [vmem:[#allocation2 + $0x78] sm:$0xff]
  %v580 = vld [vmem:[#allocation2 + $0x80] sm:$0xff]
  %v581 = vld [vmem:[#allocation2 + $0x88] sm:$0xff]
  %v582 = vld [vmem:[#allocation2 + $0x90] sm:$0xff]
  %v583 = vld [vmem:[#allocation2 + $0x98] sm:$0xff]
  %v584 = vld [vmem:[#allocation2 + $0xa0] sm:$0xff]
  %v585 = vld [vmem:[#allocation2 + $0xa8] sm:$0xff]
  %v586 = vld [vmem:[#allocation2 + $0xb0] sm:$0xff]
  %v587 = vld [vmem:[#allocation2 + $0xb8] sm:$0xff]
  %v588 = vld [vmem:[#allocation2 + $0xc0] sm:$0xff]
  %v589 = vld [vmem:[#allocation2 + $0xc8] sm:$0xff]
  %v590 = vld [vmem:[#allocation2 + $0xd0] sm:$0xff]
  %v591 = vld [vmem:[#allocation2 + $0xd8] sm:$0xff]
  %v592 = vld [vmem:[#allocation2 + $0xe0] sm:$0xff]
  %v593 = vld [vmem:[#allocation2 + $0xe8] sm:$0xff]
  %v594 = vld [vmem:[#allocation2 + $0xf0] sm:$0xff]
  %v595 = vld [vmem:[#allocation2 + $0xf8] sm:$0xff]
  %v596 = vld [vmem:[#allocation2 + $0x100] sm:$0xff]
  %v597 = vld [vmem:[#allocation2 + $0x108] sm:$0xff]
  %v598 = vld [vmem:[#allocation2 + $0x110] sm:$0xff]
  %v599 = vld [vmem:[#allocation2 + $0x118] sm:$0xff]
  %vm600 = vcmask 588800
  %v602 = vsel %vm600, %v563, 0
  %604 = vmatprep.subr.mxu0 %v565
  %605 = vmatpush1.msra.mxu0 %v564
  %606 = vmatprep.subr.mxu0 %v569
  %607 = vmatpush1.msra.mxu0 %v568
  %608 = vmatprep.subr.mxu0 %v573
  %609 = vmatpush1.msra.mxu0 %v572
  %610 = vmatprep.subr.mxu0 %v577
  %611 = vmatpush1.msra.mxu0 %v576
  %612 = vmatprep.subr.mxu0 %v581
  %613 = vmatpush1.msra.mxu0 %v580
  %614 = vmatprep.subr.mxu0 %v585
  %615 = vmatpush1.msra.mxu0 %v584
  %616 = vmatprep.subr.mxu0 %v589
  %617 = vmatpush1.msra.mxu0 %v588
  %618 = vmatprep.subr.mxu0 %v593
  %619 = vmatpush1.msra.mxu0 %v592
  %620 = vmatprep.subr.mxu0 %v597
  %621 = vmatpush1.msra.mxu0 %v596
  %622 = vmatprep.subr.mxu0 0.0
  %623 = vmatpush1.msra.mxu0 0.0
  %624 = vmatprep.subr.mxu0 0.0
  %625 = vmatpush1.msra.mxu0 0.0
  %626 = vmatprep.subr.mxu0 0.0
  %627 = vmatpush1.msra.mxu0 0.0
  %628 = vmatprep.subr.mxu0 0.0
  %629 = vmatpush1.msra.mxu0 0.0
  %630 = vmatprep.subr.mxu0 0.0
  %631 = vmatpush1.msra.mxu0 0.0
  %632 = vmatprep.subr.mxu0 0.0
  %633 = vmatpush1.msra.mxu0 0.0
  %634 = vmatprep.subr.mxu0 0.0
  %635 = vmatpush1.msra.mxu0 0.0
  %636 = vmatprep.subr.mxu0 0.0
  %637 = vmatpush1.msra.mxu0 0.0
  %638 = vmatprep.subr.mxu0 0.0
  %639 = vmatpush1.msra.mxu0 0.0
  %640 = vmatprep.subr.mxu0 0.0
  %641 = vmatpush1.msra.mxu0 0.0
  %642 = vmatprep.subr.mxu0 0.0
  %643 = vmatpush1.msra.mxu0 0.0
  %644 = vmatprep.subr.mxu0 0.0
  %645 = vmatpush1.msra.mxu0 0.0
  %646 = vmatprep.subr.mxu0 0.0
  %647 = vmatpush1.msra.mxu0 0.0
  %648 = vmatprep.subr.mxu0 0.0
  %649 = vmatpush1.msra.mxu0 0.0
  %650 = vmatprep.subr.mxu0 0.0
  %651 = vmatpush1.msra.mxu0 0.0
  %652 = vmatprep.subr.mxu0 0.0
  %653 = vmatpush1.msra.mxu0 0.0
  %654 = vmatprep.subr.mxu0 0.0
  %655 = vmatpush1.msra.mxu0 0.0
  %656 = vmatprep.subr.mxu0 0.0
  %657 = vmatpush1.msra.mxu0 0.0
  %658 = vmatprep.subr.mxu0 0.0
  %659 = vmatpush1.msra.mxu0 0.0
  %660 = vmatprep.subr.mxu0 0.0
  %661 = vmatpush1.msra.mxu0 0.0
  %662 = vmatprep.subr.mxu0 0.0
  %663 = vmatpush1.msra.mxu0 0.0
  %664 = vmatprep.subr.mxu0 0.0
  %665 = vmatpush1.msra.mxu0 0.0
  %666 = vmatprep.subr.mxu0 0.0
  %667 = vmatpush1.msra.mxu0 0.0
  %668 = vmatprep.mubr.f32.mxu0 0.0
  %669 = vmatmul.mubr.f32.gmra.mrb[0].mxu0 %v602
  %v670 = vpop.f32.mrb[0].mxu0
  %v671 = vadd.f32 0.0, %v670
  %v672 = vpop.f32.mrb[0].mxu0
  %v673 = vadd.f32 0.0, %v672
  %674 = vdwg.mxu0
  %675 = vmatprep.subr.mxu0 %v567
  %676 = vmatpush1.msra.mxu0 %v566
  %677 = vmatprep.subr.mxu0 %v571
  %678 = vmatpush1.msra.mxu0 %v570
  %679 = vmatprep.subr.mxu0 %v575
  %680 = vmatpush1.msra.mxu0 %v574
  %681 = vmatprep.subr.mxu0 %v579
  %682 = vmatpush1.msra.mxu0 %v578
  %683 = vmatprep.subr.mxu0 %v583
  %684 = vmatpush1.msra.mxu0 %v582
  %685 = vmatprep.subr.mxu0 %v587
  %686 = vmatpush1.msra.mxu0 %v586
  %687 = vmatprep.subr.mxu0 %v591
  %688 = vmatpush1.msra.mxu0 %v590
  %689 = vmatprep.subr.mxu0 %v595
  %690 = vmatpush1.msra.mxu0 %v594
  %691 = vmatprep.subr.mxu0 %v599
  %692 = vmatpush1.msra.mxu0 %v598
  %693 = vmatprep.subr.mxu0 0.0
  %694 = vmatpush1.msra.mxu0 0.0
  %695 = vmatprep.subr.mxu0 0.0
  %696 = vmatpush1.msra.mxu0 0.0
  %697 = vmatprep.subr.mxu0 0.0
  %698 = vmatpush1.msra.mxu0 0.0
  %699 = vmatprep.subr.mxu0 0.0
  %700 = vmatpush1.msra.mxu0 0.0
  %701 = vmatprep.subr.mxu0 0.0
  %702 = vmatpush1.msra.mxu0 0.0
  %703 = vmatprep.subr.mxu0 0.0
  %704 = vmatpush1.msra.mxu0 0.0
  %705 = vmatprep.subr.mxu0 0.0
  %706 = vmatpush1.msra.mxu0 0.0
  %707 = vmatprep.subr.mxu0 0.0
  %708 = vmatpush1.msra.mxu0 0.0
  %709 = vmatprep.subr.mxu0 0.0
  %710 = vmatpush1.msra.mxu0 0.0
  %711 = vmatprep.subr.mxu0 0.0
  %712 = vmatpush1.msra.mxu0 0.0
  %713 = vmatprep.subr.mxu0 0.0
  %714 = vmatpush1.msra.mxu0 0.0
  %715 = vmatprep.subr.mxu0 0.0
  %716 = vmatpush1.msra.mxu0 0.0
  %717 = vmatprep.subr.mxu0 0.0
  %718 = vmatpush1.msra.mxu0 0.0
  %719 = vmatprep.subr.mxu0 0.0
  %720 = vmatpush1.msra.mxu0 0.0
  %721 = vmatprep.subr.mxu0 0.0
  %722 = vmatpush1.msra.mxu0 0.0
  %723 = vmatprep.subr.mxu0 0.0
  %724 = vmatpush1.msra.mxu0 0.0
  %725 = vmatprep.subr.mxu0 0.0
  %726 = vmatpush1.msra.mxu0 0.0
  %727 = vmatprep.subr.mxu0 0.0
  %728 = vmatpush1.msra.mxu0 0.0
  %729 = vmatprep.subr.mxu0 0.0
  %730 = vmatpush1.msra.mxu0 0.0
  %731 = vmatprep.subr.mxu0 0.0
  %732 = vmatpush1.msra.mxu0 0.0
  %733 = vmatprep.subr.mxu0 0.0
  %734 = vmatpush1.msra.mxu0 0.0
  %735 = vmatprep.subr.mxu0 0.0
  %736 = vmatpush1.msra.mxu0 0.0
  %737 = vmatprep.subr.mxu0 0.0
  %738 = vmatpush1.msra.mxu0 0.0
  %739 = vmatprep.mubr.f32.mxu0 0.0
  %740 = vmatmul.mubr.f32.gmra.mrb[0].mxu0 %v602
  %v741 = vpop.f32.mrb[0].mxu0
  %v742 = vadd.f32 0.0, %v741
  %v743 = vpop.f32.mrb[0].mxu0
  %v744 = vadd.f32 0.0, %v743
  %745 = vdwg.mxu0
  %v746 = vsub.f32 0.0, %v671
  %v747 = vsub.f32 0.0, %v673
  %v748 = vsub.f32 0.0, %v742
  %v749 = vsub.f32 0.0, %v744
  %v750 = vmul.f32 %v746, 1.442695
  %v751 = vpow.pop %v750
  %v752 = vmul.f32 %v747, 1.442695
  %v753 = vpow.pop %v752
  %v754 = vmul.f32 %v748, 1.442695
  %v755 = vpow.pop %v754
  %v756 = vmul.f32 %v749, 1.442695
  %v757 = vpow.pop %v756
  %v758 = vadd.f32 %v751, 1.0
  %v759 = vadd.f32 %v753, 1.0
  %v760 = vadd.f32 %v755, 1.0
  %v761 = vadd.f32 %v757, 1.0
  %v762 = vrcp.pop %v758
  %v763 = vrcp.pop %v759
  %v764 = vrcp.pop %v760
  %v765 = vrcp.pop %v761
  %v766 = vmul.f32 %v671, %v762
  %v767 = vmul.f32 %v673, %v763
  %v768 = vmul.f32 %v742, %v764
  %v769 = vmul.f32 %v744, %v765
  %770 = vst [vmem:[%s3] sm:$0xff] %v766
  %771 = vst [vmem:[%s3 + $0x8] sm:$0xff] %v767
  %s772 = scalar_lea.vmem %s3, 16
  %773 = vst [vmem:[%s772] sm:$0xff] %v768
  %774 = vst [vmem:[%s772 + $0x8] sm:$0xff] %v769
  // Predicated region
  $region14: #{conv_bn_silu.1} parent=0 // pred_check
    _
  $region15: #{conv_bn_silu.1} parent=0 // pred_check_branch
    %776 = sbr.rel (0) target = $region17
  $region16: #{conv_bn_silu.1} parent=0 // pred_region
    _
  $region17: #{conv_bn_silu.1} parent=0 // pred_fallthru
    _
  // Predicated region
  $region18: #{conv_bn_silu.1} parent=0 // pred_check
    _
  $region19: #{conv_bn_silu.1} parent=0 // pred_check_branch
    %778 = sbr.rel (0) target = $region21
  $region20: #{conv_bn_silu.1} parent=0 // pred_region
    _
  $region21: #{conv_bn_silu.1} parent=0 // pred_fallthru
    _

</llo_original>
